<compile_context>
chip_gen: v6e
topology: v6e:2x2x1
jax: 0.10.0
libtpu: 0.0.40
codegen_flags: <defaults>
</compile_context>

<pallas_src>
import jax
import jax.numpy as jnp
from jax.experimental import pallas as pl
from jax.experimental.pallas import tpu as pltpu


def server_mlp_kernel(x_ref, w1_ref, b1_ref, w2_ref, b2_ref, w3_ref, b3_ref, o_ref):
    # x_ref: (TILE_B, F) f32. Weights are passed pre-transposed to (in, out); biases
    # as (1, out) rows. All f32 (PyTorch parity) with f32 MXU accumulation.
    x = x_ref[...]
    h = jnp.dot(x, w1_ref[...], preferred_element_type=jnp.float32) + b1_ref[...]
    h = jnp.maximum(h, 0.0)                                      # (TILE_B, 32)
    h = jnp.dot(h, w2_ref[...], preferred_element_type=jnp.float32) + b2_ref[...]
    h = jnp.maximum(h, 0.0)                                      # (TILE_B, 16)
    z = jnp.dot(h, w3_ref[...], preferred_element_type=jnp.float32) + b3_ref[...]
    o_ref[...] = jax.nn.sigmoid(z)                               # (TILE_B, 1)


def _round_up(n, m):
    return ((n + m - 1) // m) * m


def _choose_tile_b(batch, max_tile_b):
    """Auto-size the batch tile: as large as VMEM comfortably allows (cap max_tile_b),
    a multiple of 8 (sublane), and an even number (>= 2) of grid steps so both v7x
    TensorCores get equal work under dimension_semantics=("parallel",)."""
    b8 = _round_up(batch, 8)
    if b8 <= 16:
        return b8                                   # too small to split across 2 steps
    n_steps = max(2, 2 * pl.cdiv(pl.cdiv(b8, max_tile_b), 2))    # even, >= 2
    return min(_round_up(pl.cdiv(b8, n_steps), 8), _round_up(max_tile_b, 8))


def server_model_forward(x, params, *, max_tile_b=2048):
    """x: (B, input_size) f32 (native layout, no transpose/cast copy).
    Returns (B, 1) f32 probabilities with PyTorch ServerModel semantics."""
    w1, b1, w2, b2, w3, b3 = params         # PyTorch orientation: w (out, in), b (out,)
    B, F = x.shape
    x = x.astype(jnp.float32)

    tile_b = _choose_tile_b(B, max_tile_b)
    Bp = _round_up(B, tile_b)
    if Bp != B:
        # Zero-pad only the ragged tail (< tile_b rows): zero rows stay finite through
        # sigmoid and are sliced off below. No pad at all when the tile divides B.
        x = jnp.pad(x, ((0, Bp - B), (0, 0)))
    grid = (Bp // tile_b,)

    # Tiny one-time relayouts of the *resident* operands only (never the streamed x).
    w1_t, w2_t, w3_t = w1.T, w2.T, w3.T               # (in, out): kernel does x @ W.T
    b1_r, b2_r, b3_r = (b.reshape(1, -1) for b in (b1, b2, b3))

    const = lambda i: (0, 0)  # same block every step -> VMEM-resident, no re-DMA
    flops = 2 * Bp * (F * 32 + 32 * 16 + 16 * 1)
    bytes_accessed = (4 * Bp * (F + 1)
                      + 4 * sum(a.size for a in (w1, b1, w2, b2, w3, b3)))

    out = pl.pallas_call(
        server_mlp_kernel,
        out_shape=jax.ShapeDtypeStruct((Bp, 1), jnp.float32),
        grid=grid,
        in_specs=[
            pl.BlockSpec((tile_b, F), lambda i: (i, 0)),   # streamed, double-buffered
            pl.BlockSpec(w1_t.shape, const),
            pl.BlockSpec(b1_r.shape, const),
            pl.BlockSpec(w2_t.shape, const),
            pl.BlockSpec(b2_r.shape, const),
            pl.BlockSpec(w3_t.shape, const),
            pl.BlockSpec(b3_r.shape, const),
        ],
        out_specs=pl.BlockSpec((tile_b, 1), lambda i: (i, 0)),
        compiler_params=pltpu.CompilerParams(
            dimension_semantics=("parallel",),   # batch steps shard across TCs on v7x
        ),
        cost_estimate=pl.CostEstimate(
            flops=flops, transcendentals=Bp, bytes_accessed=bytes_accessed),
    )(x, w1_t, b1_r, w2_t, b2_r, w3_t, b3_r)

    return out[:B] if Bp != B else out


def init_params(key, input_size):
    # PyTorch nn.Linear default init: U(-1/sqrt(fan_in), 1/sqrt(fan_in));
    # weights stored (out, in), biases stored (out,).
    def linear(k, fan_in, fan_out):
        kw, kb = jax.random.split(k)
        bound = 1.0 / jnp.sqrt(jnp.float32(fan_in))
        w = jax.random.uniform(kw, (fan_out, fan_in), jnp.float32, -bound, bound)
        b = jax.random.uniform(kb, (fan_out,), jnp.float32, -bound, bound)
        return w, b

    k1, k2, k3 = jax.random.split(key, 3)
    w1, b1 = linear(k1, input_size, 32)
    w2, b2 = linear(k2, 32, 16)
    w3, b3 = linear(k3, 16, 1)
    return (w1, b1, w2, b2, w3, b3)


def reference_forward(x, params):
    # Pure-f32 JAX reference matching the PyTorch module exactly.
    w1, b1, w2, b2, w3, b3 = params
    h = jnp.maximum(x @ w1.T + b1, 0.0)
    h = jnp.maximum(h @ w2.T + b2, 0.0)
    return jax.nn.sigmoid(h @ w3.T + b3)


if __name__ == "__main__":
    key = jax.random.PRNGKey(0)
    k_x, k_p = jax.random.split(key)

    batch = 300        # non-multiple of the tile: exercises the padded-tail path
    input_size = 12    # e.g. concatenated client embeddings in the VFL setup
    x = jax.random.normal(k_x, (batch, input_size), jnp.float32)
    params = init_params(k_p, input_size)

    out = jax.block_until_ready(server_model_forward(x, params))
    assert out.shape == (batch, 1), out.shape

    ref = reference_forward(x, params)
    max_err = float(jnp.max(jnp.abs(out - ref)))
    assert jnp.allclose(out, ref, atol=5e-3, rtol=5e-3), max_err

    print("KERNEL_OK")
</pallas_src>

<mosaic_0001>
module attributes {stable_mosaic.version = 11 : i64} {
  func.func @server_mlp_kernel(%arg0: i32, %arg1: memref<152x12xf32, #tpu.memory_space<vmem>>, %arg2: memref<12x32xf32, #tpu.memory_space<vmem>>, %arg3: memref<1x32xf32, #tpu.memory_space<vmem>>, %arg4: memref<32x16xf32, #tpu.memory_space<vmem>>, %arg5: memref<1x16xf32, #tpu.memory_space<vmem>>, %arg6: memref<16x1xf32, #tpu.memory_space<vmem>>, %arg7: memref<1x1xf32, #tpu.memory_space<vmem>>, %arg8: memref<152x1xf32, #tpu.memory_space<vmem>>) attributes {dimension_semantics = [#tpu.dimension_semantics<parallel>], iteration_bounds = array<i64: 2>, scalar_prefetch = 0 : i64, scratch_operands = 0 : i64, tpu.core_type = #tpu.core_type<tc>, window_params = [{transform_indices = @transform_0, window_bounds = array<i64: 152, 12>}, {pipeline_mode = #tpu.pipeline_mode<synchronous>, transform_indices = @transform_1, window_bounds = array<i64: 12, 32>}, {pipeline_mode = #tpu.pipeline_mode<synchronous>, transform_indices = @transform_2, window_bounds = array<i64: 1, 32>}, {pipeline_mode = #tpu.pipeline_mode<synchronous>, transform_indices = @transform_3, window_bounds = array<i64: 32, 16>}, {pipeline_mode = #tpu.pipeline_mode<synchronous>, transform_indices = @transform_4, window_bounds = array<i64: 1, 16>}, {pipeline_mode = #tpu.pipeline_mode<synchronous>, transform_indices = @transform_5, window_bounds = array<i64: 16, 1>}, {pipeline_mode = #tpu.pipeline_mode<synchronous>, transform_indices = @transform_6, window_bounds = array<i64: 1, 1>}, {transform_indices = @transform_7, window_bounds = array<i64: 152, 1>}]} {
    %c0 = arith.constant 0 : index
    %c0_0 = arith.constant 0 : index
    %0 = vector.load %arg1[%c0, %c0_0] : memref<152x12xf32, #tpu.memory_space<vmem>>, vector<152x12xf32>
    %c0_1 = arith.constant 0 : index
    %c0_2 = arith.constant 0 : index
    %1 = vector.load %arg2[%c0_1, %c0_2] : memref<12x32xf32, #tpu.memory_space<vmem>>, vector<12x32xf32>
    %cst = arith.constant dense<0.000000e+00> : vector<152x32xf32>
    %2 = tpu.matmul %0, %1, %cst {dimension_numbers = #tpu.dot_dimension_numbers<[1], [0], [0], [1], [0, 0, 1, 1], [], []>} : vector<152x12xf32>, vector<12x32xf32>, vector<152x32xf32> -> vector<152x32xf32>
    %c0_3 = arith.constant 0 : index
    %c0_4 = arith.constant 0 : index
    %3 = vector.load %arg3[%c0_3, %c0_4] : memref<1x32xf32, #tpu.memory_space<vmem>>, vector<1x32xf32>
    %4 = vector.broadcast %3 : vector<1x32xf32> to vector<152x32xf32>
    %5 = arith.addf %2, %4 : vector<152x32xf32>
    %cst_5 = arith.constant 0.000000e+00 : f32
    %6 = vector.broadcast %cst_5 : f32 to vector<152x32xf32>
    %7 = arith.maximumf %5, %6 : vector<152x32xf32>
    %c0_6 = arith.constant 0 : index
    %c0_7 = arith.constant 0 : index
    %8 = vector.load %arg4[%c0_6, %c0_7] : memref<32x16xf32, #tpu.memory_space<vmem>>, vector<32x16xf32>
    %cst_8 = arith.constant dense<0.000000e+00> : vector<152x16xf32>
    %9 = tpu.matmul %7, %8, %cst_8 {dimension_numbers = #tpu.dot_dimension_numbers<[1], [0], [0], [1], [0, 0, 1, 1], [], []>} : vector<152x32xf32>, vector<32x16xf32>, vector<152x16xf32> -> vector<152x16xf32>
    %c0_9 = arith.constant 0 : index
    %c0_10 = arith.constant 0 : index
    %10 = vector.load %arg5[%c0_9, %c0_10] : memref<1x16xf32, #tpu.memory_space<vmem>>, vector<1x16xf32>
    %11 = vector.broadcast %10 : vector<1x16xf32> to vector<152x16xf32>
    %12 = arith.addf %9, %11 : vector<152x16xf32>
    %cst_11 = arith.constant 0.000000e+00 : f32
    %13 = vector.broadcast %cst_11 : f32 to vector<152x16xf32>
    %14 = arith.maximumf %12, %13 : vector<152x16xf32>
    %c0_12 = arith.constant 0 : index
    %c0_13 = arith.constant 0 : index
    %15 = vector.load %arg6[%c0_12, %c0_13] : memref<16x1xf32, #tpu.memory_space<vmem>>, vector<16x1xf32>
    %cst_14 = arith.constant dense<0.000000e+00> : vector<152x1xf32>
    %16 = tpu.matmul %14, %15, %cst_14 {dimension_numbers = #tpu.dot_dimension_numbers<[1], [0], [0], [1], [0, 0, 1, 1], [], []>} : vector<152x16xf32>, vector<16x1xf32>, vector<152x1xf32> -> vector<152x1xf32>
    %c0_15 = arith.constant 0 : index
    %c0_16 = arith.constant 0 : index
    %17 = vector.load %arg7[%c0_15, %c0_16] : memref<1x1xf32, #tpu.memory_space<vmem>>, vector<1x1xf32>
    %18 = vector.broadcast %17 : vector<1x1xf32> to vector<152x1xf32>
    %19 = arith.addf %16, %18 : vector<152x1xf32>
    %20 = arith.negf %19 : vector<152x1xf32>
    %21 = math.exp %20 : vector<152x1xf32>
    %cst_17 = arith.constant 1.000000e+00 : f32
    %22 = vector.broadcast %cst_17 : f32 to vector<152x1xf32>
    %23 = arith.addf %22, %21 : vector<152x1xf32>
    %24 = arith.divf %22, %23 : vector<152x1xf32>
    %c0_18 = arith.constant 0 : index
    %c0_19 = arith.constant 0 : index
    %25 = vector.load %arg8[%c0_18, %c0_19] : memref<152x1xf32, #tpu.memory_space<vmem>>, vector<152x1xf32>
    tpu.vector_store %arg8[%c0_18, %c0_19], %24 {strides = array<i32>} : memref<152x1xf32, #tpu.memory_space<vmem>>, vector<152x1xf32>,
    return
  }
  func.func @transform_0(%arg0: i32) -> (i32, i32) {
    %c0_i32 = arith.constant 0 : i32
    %c0_i32_0 = arith.constant 0 : i32
    return %arg0, %c0_i32 : i32, i32
  }
  func.func @transform_1(%arg0: i32) -> (i32, i32) {
    %c0_i32 = arith.constant 0 : i32
    %c0_i32_0 = arith.constant 0 : i32
    %c0_i32_1 = arith.constant 0 : i32
    return %c0_i32, %c0_i32_0 : i32, i32
  }
  func.func @transform_2(%arg0: i32) -> (i32, i32) {
    %c0_i32 = arith.constant 0 : i32
    %c0_i32_0 = arith.constant 0 : i32
    %c0_i32_1 = arith.constant 0 : i32
    return %c0_i32, %c0_i32_0 : i32, i32
  }
  func.func @transform_3(%arg0: i32) -> (i32, i32) {
    %c0_i32 = arith.constant 0 : i32
    %c0_i32_0 = arith.constant 0 : i32
    %c0_i32_1 = arith.constant 0 : i32
    return %c0_i32, %c0_i32_0 : i32, i32
  }
  func.func @transform_4(%arg0: i32) -> (i32, i32) {
    %c0_i32 = arith.constant 0 : i32
    %c0_i32_0 = arith.constant 0 : i32
    %c0_i32_1 = arith.constant 0 : i32
    return %c0_i32, %c0_i32_0 : i32, i32
  }
  func.func @transform_5(%arg0: i32) -> (i32, i32) {
    %c0_i32 = arith.constant 0 : i32
    %c0_i32_0 = arith.constant 0 : i32
    %c0_i32_1 = arith.constant 0 : i32
    return %c0_i32, %c0_i32_0 : i32, i32
  }
  func.func @transform_6(%arg0: i32) -> (i32, i32) {
    %c0_i32 = arith.constant 0 : i32
    %c0_i32_0 = arith.constant 0 : i32
    %c0_i32_1 = arith.constant 0 : i32
    return %c0_i32, %c0_i32_0 : i32, i32
  }
  func.func @transform_7(%arg0: i32) -> (i32, i32) {
    %c0_i32 = arith.constant 0 : i32
    %c0_i32_0 = arith.constant 0 : i32
    return %arg0, %c0_i32 : i32, i32
  }
}

</mosaic_0001>

<llo_original>
// kernel: tpu_custom_call.1
$region0: #{tpu_custom_call.1}
  #allocation0 [shape = 'u32[]', space=smem, size = 0x4, offset = 0x4, fixed_abs, tag = 'smem constant byte address 0x4 - core index']
  #allocation1 [shape = 'u32[144,128]{1,0:T(1,128)}', space=vmem, size = 0x12000, scoped, tag = 'internal scratch']
  #allocation2 [shape = 'f32[1,1]{1,0:T(1,128)S(1)}', space=vmem, size = 0x200, scoped, tag = 'scoped memory for tpu_custom_call.1']
  %s0 = inlined_call_operand.vmem [shape: f32[304,12], index: 0, kind: input, shape index: {}]
  %s1 = inlined_call_operand.vmem [shape: f32[12,32], index: 1, kind: input, shape index: {}]
  %s2 = inlined_call_operand.vmem [shape: f32[1,32], index: 2, kind: input, shape index: {}]
  %s3 = inlined_call_operand.vmem [shape: f32[32,16], index: 3, kind: input, shape index: {}]
  %s4 = inlined_call_operand.vmem [shape: f32[1,16], index: 4, kind: input, shape index: {}]
  %s5 = inlined_call_operand.vmem [shape: f32[16,1], index: 5, kind: input, shape index: {}]
  %s6 = inlined_call_operand.<no memory space> [shape: f32[1,1], index: 6, kind: input, shape index: {}]
  %s7 = inlined_call_operand.vmem [shape: f32[304,1], index: 7, kind: output, shape index: {}]
  %s8 = sld [smem:[#allocation0]]
  $region61: #{tpu_custom_call.1} parent=0
    _
  %s10 = ssub.s32 1, %s8
  %s11 = scalar_select 0, %s10, %s8
  %v12 = vstv %s6
  %13 = vst [vmem:[#allocation2] sm:$0x1] %v12
  loop: start=0, step=1, limit=4
  $region2: #{tpu_custom_call.1} parent=0 // loop_pre_header
    _
  $region3: #{tpu_custom_call.1} parent=0 // loop_header
    %s15 = sphi 0, %s19
    %p16 = scmp.ge.s32.totalorder %s15, 4
    %s25 = sphi 0, %s27
    %s28 = sphi 0, %s25
    %s29 = sphi 0, %s28
    %s45 = sphi 0, %s29
    %s49 = sphi 0, %s49
    %s51 = sphi 0, %s49
    %s52 = sphi 0, %s51
    %s66 = sphi 0, %s52
    %s70 = sphi 0, %s70
    %s72 = sphi 0, %s70
    %s73 = sphi 0, %s72
    %s87 = sphi 0, %s73
    %s91 = sphi 0, %s91
    %s93 = sphi 0, %s91
    %s94 = sphi 0, %s93
    %s108 = sphi 0, %s94
    %s112 = sphi 0, %s112
    %s114 = sphi 0, %s112
    %s115 = sphi 0, %s114
    %s129 = sphi 0, %s115
    %s133 = sphi 0, %s133
    %s135 = sphi 0, %s133
    %s136 = sphi 0, %s135
    %s150 = sphi 0, %s136
    %s154 = sphi 0, %s154
    %s156 = sphi 0, %s154
    %s157 = sphi 0, %s156
    %s171 = sphi 0, %s157
    %s177 = sphi 0, %s179
    %s180 = sphi 0, %s177
    %s181 = sphi 0, %s180
    %s197 = sphi 0, %s181
  $region4: #{tpu_custom_call.1} parent=0 // loop_header_branch
    %18 = sbr.rel (%p16) target = $region8
  $region5: #{tpu_custom_call.1} parent=0 // loop_body
    %s20 = ssub.s32 %s15, 1
    %s21 = ssub.s32 %s15, 2
    %s22 = sadd.s32 %s15, 1
    %s23 = ssub.s32 %s15, %s22
    %p24 = scmp.eq.s32.totalorder %s23, 0
    %s26 = sadd.s32 %s25, 1
    %s27 = scalar_select %p24, %s25, %s26
    %p30 = pneg %p24
    %p31 = scmp.eq.s32.totalorder %s15, 1
    %p32 = por %p30, %p31
    %p33 = scmp.ne.s32.totalorder %s25, %s28
    %p34 = scmp.eq.s32.totalorder %s15, 0
    %p35 = por %p33, %p34
    %p36 = scmp.ne.s32.totalorder %s25, %s28
    %p37 = scmp.eq.s32.totalorder %s20, 1
    %p38 = por %p36, %p37
    %p39 = scmp.ne.s32.totalorder %s28, %s29
    %p40 = scmp.eq.s32.totalorder %s20, 0
    %p41 = por %p39, %p40
    %p42 = scmp.ne.s32.totalorder %s28, %s29
    %p43 = scmp.eq.s32.totalorder %s21, 1
    %p44 = por %p42, %p43
    %p46 = scmp.ne.s32.totalorder %s29, %s45
    %p47 = scmp.eq.s32.totalorder %s21, 0
    %p48 = por %p46, %p47
    %s50 = sadd.s32 %s49, 1
    %p53 = scmp.eq.s32.totalorder %s15, 1
    %p54 = scmp.ne.s32.totalorder %s49, %s51
    %p55 = scmp.eq.s32.totalorder %s15, 0
    %p56 = por %p54, %p55
    %p57 = scmp.ne.s32.totalorder %s49, %s51
    %p58 = scmp.eq.s32.totalorder %s20, 1
    %p59 = por %p57, %p58
    %p60 = scmp.ne.s32.totalorder %s51, %s52
    %p61 = scmp.eq.s32.totalorder %s20, 0
    %p62 = por %p60, %p61
    %p63 = scmp.ne.s32.totalorder %s51, %s52
    %p64 = scmp.eq.s32.totalorder %s21, 1
    %p65 = por %p63, %p64
    %p67 = scmp.ne.s32.totalorder %s52, %s66
    %p68 = scmp.eq.s32.totalorder %s21, 0
    %p69 = por %p67, %p68
    %s71 = sadd.s32 %s70, 1
    %p74 = scmp.eq.s32.totalorder %s15, 1
    %p75 = scmp.ne.s32.totalorder %s70, %s72
    %p76 = scmp.eq.s32.totalorder %s15, 0
    %p77 = por %p75, %p76
    %p78 = scmp.ne.s32.totalorder %s70, %s72
    %p79 = scmp.eq.s32.totalorder %s20, 1
    %p80 = por %p78, %p79
    %p81 = scmp.ne.s32.totalorder %s72, %s73
    %p82 = scmp.eq.s32.totalorder %s20, 0
    %p83 = por %p81, %p82
    %p84 = scmp.ne.s32.totalorder %s72, %s73
    %p85 = scmp.eq.s32.totalorder %s21, 1
    %p86 = por %p84, %p85
    %p88 = scmp.ne.s32.totalorder %s73, %s87
    %p89 = scmp.eq.s32.totalorder %s21, 0
    %p90 = por %p88, %p89
    %s92 = sadd.s32 %s91, 1
    %p95 = scmp.eq.s32.totalorder %s15, 1
    %p96 = scmp.ne.s32.totalorder %s91, %s93
    %p97 = scmp.eq.s32.totalorder %s15, 0
    %p98 = por %p96, %p97
    %p99 = scmp.ne.s32.totalorder %s91, %s93
    %p100 = scmp.eq.s32.totalorder %s20, 1
    %p101 = por %p99, %p100
    %p102 = scmp.ne.s32.totalorder %s93, %s94
    %p103 = scmp.eq.s32.totalorder %s20, 0
    %p104 = por %p102, %p103
    %p105 = scmp.ne.s32.totalorder %s93, %s94
    %p106 = scmp.eq.s32.totalorder %s21, 1
    %p107 = por %p105, %p106
    %p109 = scmp.ne.s32.totalorder %s94, %s108
    %p110 = scmp.eq.s32.totalorder %s21, 0
    %p111 = por %p109, %p110
    %s113 = sadd.s32 %s112, 1
    %p116 = scmp.eq.s32.totalorder %s15, 1
    %p117 = scmp.ne.s32.totalorder %s112, %s114
    %p118 = scmp.eq.s32.totalorder %s15, 0
    %p119 = por %p117, %p118
    %p120 = scmp.ne.s32.totalorder %s112, %s114
    %p121 = scmp.eq.s32.totalorder %s20, 1
    %p122 = por %p120, %p121
    %p123 = scmp.ne.s32.totalorder %s114, %s115
    %p124 = scmp.eq.s32.totalorder %s20, 0
    %p125 = por %p123, %p124
    %p126 = scmp.ne.s32.totalorder %s114, %s115
    %p127 = scmp.eq.s32.totalorder %s21, 1
    %p128 = por %p126, %p127
    %p130 = scmp.ne.s32.totalorder %s115, %s129
    %p131 = scmp.eq.s32.totalorder %s21, 0
    %p132 = por %p130, %p131
    %s134 = sadd.s32 %s133, 1
    %p137 = scmp.eq.s32.totalorder %s15, 1
    %p138 = scmp.ne.s32.totalorder %s133, %s135
    %p139 = scmp.eq.s32.totalorder %s15, 0
    %p140 = por %p138, %p139
    %p141 = scmp.ne.s32.totalorder %s133, %s135
    %p142 = scmp.eq.s32.totalorder %s20, 1
    %p143 = por %p141, %p142
    %p144 = scmp.ne.s32.totalorder %s135, %s136
    %p145 = scmp.eq.s32.totalorder %s20, 0
    %p146 = por %p144, %p145
    %p147 = scmp.ne.s32.totalorder %s135, %s136
    %p148 = scmp.eq.s32.totalorder %s21, 1
    %p149 = por %p147, %p148
    %p151 = scmp.ne.s32.totalorder %s136, %s150
    %p152 = scmp.eq.s32.totalorder %s21, 0
    %p153 = por %p151, %p152
    %s155 = sadd.s32 %s154, 1
    %p158 = scmp.eq.s32.totalorder %s15, 1
    %p159 = scmp.ne.s32.totalorder %s154, %s156
    %p160 = scmp.eq.s32.totalorder %s15, 0
    %p161 = por %p159, %p160
    %p162 = scmp.ne.s32.totalorder %s154, %s156
    %p163 = scmp.eq.s32.totalorder %s20, 1
    %p164 = por %p162, %p163
    %p165 = scmp.ne.s32.totalorder %s156, %s157
    %p166 = scmp.eq.s32.totalorder %s20, 0
    %p167 = por %p165, %p166
    %p168 = scmp.ne.s32.totalorder %s156, %s157
    %p169 = scmp.eq.s32.totalorder %s21, 1
    %p170 = por %p168, %p169
    %p172 = scmp.ne.s32.totalorder %s157, %s171
    %p173 = scmp.eq.s32.totalorder %s21, 0
    %p174 = por %p172, %p173
    %s175 = ssub.s32 %s15, %s22
    %p176 = scmp.eq.s32.totalorder %s175, 0
    %s178 = sadd.s32 %s177, 1
    %s179 = scalar_select %p176, %s177, %s178
    %p182 = pneg %p176
    %p183 = scmp.eq.s32.totalorder %s15, 1
    %p184 = por %p182, %p183
    %p185 = scmp.ne.s32.totalorder %s177, %s180
    %p186 = scmp.eq.s32.totalorder %s15, 0
    %p187 = por %p185, %p186
    %p188 = scmp.ne.s32.totalorder %s177, %s180
    %p189 = scmp.eq.s32.totalorder %s20, 1
    %p190 = por %p188, %p189
    %p191 = scmp.ne.s32.totalorder %s180, %s181
    %p192 = scmp.eq.s32.totalorder %s20, 0
    %p193 = por %p191, %p192
    %p194 = scmp.ne.s32.totalorder %s180, %s181
    %p195 = scmp.eq.s32.totalorder %s21, 1
    %p196 = por %p194, %p195
    %p198 = scmp.ne.s32.totalorder %s181, %s197
    %p199 = scmp.eq.s32.totalorder %s21, 0
    %p200 = por %p198, %p199
    %p201 = scmp.le.s32.totalorder 1, %s15
    %p202 = scmp.lt.s32.totalorder %s15, 3
    %p203 = pnand %p201, %p202
    %p204 = pneg %p203
    // Predicated region
    $region9: #{tpu_custom_call.1} parent=5 // pred_check
      _
    $region10: #{tpu_custom_call.1} parent=5 // pred_check_branch
      %206 = sbr.rel (%p203) target = $region12
    $region11: #{tpu_custom_call.1} parent=5 // pred_region
      %s207 = ssub.s32 %s15, 1
      // Predicated region
      $region13: #{tpu_custom_call.1} parent=11 // pred_check
        %p208 = pneg %p62
      $region14: #{tpu_custom_call.1} parent=11 // pred_check_branch
        %210 = sbr.rel (%p208) target = $region16
      $region15: #{tpu_custom_call.1} parent=11 // pred_region
        _
      $region16: #{tpu_custom_call.1} parent=11 // pred_fallthru
        _
      // Predicated region
      $region17: #{tpu_custom_call.1} parent=11 // pred_check
        %p211 = pneg %p83
      $region18: #{tpu_custom_call.1} parent=11 // pred_check_branch
        %213 = sbr.rel (%p211) target = $region20
      $region19: #{tpu_custom_call.1} parent=11 // pred_region
        _
      $region20: #{tpu_custom_call.1} parent=11 // pred_fallthru
        _
      // Predicated region
      $region21: #{tpu_custom_call.1} parent=11 // pred_check
        %p214 = pneg %p104
      $region22: #{tpu_custom_call.1} parent=11 // pred_check_branch
        %216 = sbr.rel (%p214) target = $region24
      $region23: #{tpu_custom_call.1} parent=11 // pred_region
        _
      $region24: #{tpu_custom_call.1} parent=11 // pred_fallthru
        _
      // Predicated region
      $region25: #{tpu_custom_call.1} parent=11 // pred_check
        %p217 = pneg %p125
      $region26: #{tpu_custom_call.1} parent=11 // pred_check_branch
        %219 = sbr.rel (%p217) target = $region28
      $region27: #{tpu_custom_call.1} parent=11 // pred_region
        _
      $region28: #{tpu_custom_call.1} parent=11 // pred_fallthru
        _
      // Predicated region
      $region29: #{tpu_custom_call.1} parent=11 // pred_check
        %p220 = pneg %p146
      $region30: #{tpu_custom_call.1} parent=11 // pred_check_branch
        %222 = sbr.rel (%p220) target = $region32
      $region31: #{tpu_custom_call.1} parent=11 // pred_region
        _
      $region32: #{tpu_custom_call.1} parent=11 // pred_fallthru
        _
      // Predicated region
      $region33: #{tpu_custom_call.1} parent=11 // pred_check
        %p223 = pneg %p167
      $region34: #{tpu_custom_call.1} parent=11 // pred_check_branch
        %225 = sbr.rel (%p223) target = $region36
      $region35: #{tpu_custom_call.1} parent=11 // pred_region
        _
      $region36: #{tpu_custom_call.1} parent=11 // pred_fallthru
        _
    $region12: #{tpu_custom_call.1} parent=5 // pred_fallthru
      _
    %p226 = scmp.lt.s32.totalorder %s15, 2
    // Predicated region
    $region37: #{tpu_custom_call.1} parent=5 // pred_check
      %p227 = pneg %p226
    $region38: #{tpu_custom_call.1} parent=5 // pred_check_branch
      %229 = sbr.rel (%p227) target = $region40
    $region39: #{tpu_custom_call.1} parent=5 // pred_region
      // Predicated region
      $region41: #{tpu_custom_call.1} parent=39 // pred_check
        %p230 = pneg %p35
      $region42: #{tpu_custom_call.1} parent=39 // pred_check_branch
        %232 = sbr.rel (%p230) target = $region44
      $region43: #{tpu_custom_call.1} parent=39 // pred_region
        %s233 = smul.u32 19, %s15
        %p234 = scmp.lt.s32.totalorder %s233, 37
        %s235 = scalar_select %p234, %s233, 37
        %s236 = smul.addr %s235, 8
        %s237 = scalar_lea.vmem %s0, %s236
        %s238 = smul.u32 19, %s15
      $region44: #{tpu_custom_call.1} parent=39 // pred_fallthru
        _
    $region40: #{tpu_custom_call.1} parent=5 // pred_fallthru
      _
    %p239 = scmp.le.s32.totalorder 1, %s15
    %p240 = scmp.lt.s32.totalorder %s15, 3
    %p241 = pnand %p239, %p240
    %p242 = pneg %p241
    // Predicated region
    $region45: #{tpu_custom_call.1} parent=5 // pred_check
      _
    $region46: #{tpu_custom_call.1} parent=5 // pred_check_branch
      %244 = sbr.rel (%p241) target = $region48
    $region47: #{tpu_custom_call.1} parent=5 // pred_region
      %s245 = ssub.s32 %s15, 1
      %s246 = smul.u32 19, %s20
      %p247 = scmp.lt.s32.totalorder %s246, 37
      %s248 = scalar_select %p247, %s246, 37
      %s249 = smul.addr %s248, 8
      %s250 = scalar_lea.vmem %s0, %s249
      %p251 = pneg %p41
      %p252 = pneg %p38
      %p253 = pneg %p62
      %p254 = pneg %p59
      %p255 = pneg %p83
      %p256 = pneg %p80
      %p257 = pneg %p104
      %p258 = pneg %p101
      %p259 = pneg %p125
      %p260 = pneg %p122
      %p261 = pneg %p146
      %p262 = pneg %p143
      %p263 = pneg %p167
      %p264 = pneg %p164
      %p265 = pneg %p193
      %p266 = pneg %p190
      %s267 = smul.u32 19, %s20
      %p268 = scmp.lt.s32.totalorder %s267, 37
      %s269 = scalar_select %p268, %s267, 37
      %s270 = smul.addr %s269, 8
      %s271 = scalar_lea.vmem %s7, %s270
      %s272 = smul.u32 19, %s20
      %p273 = scmp.lt.s32.totalorder %s272, 37
      %s274 = scalar_select %p273, %s272, 37
      %s275 = smul.addr %s274, 8
      %s276 = scalar_lea.vmem %s0, %s275
      %s277 = smul.u32 19, %s20
      %s278 = smul.u32 19, %s20
      %p279 = scmp.lt.s32.totalorder %s278, 37
      %s280 = scalar_select %p279, %s278, 37
      %s281 = smul.addr %s280, 8
      %s282 = scalar_lea.vmem %s7, %s281
      %s283 = smul.u32 19, %s20
      %v284 = vld [vmem:[%s276] sm:$0xff]
      %v285 = vld [vmem:[%s276 + $0x8] sm:$0xff]
      %v286 = vld [vmem:[%s276 + $0x10] sm:$0xff]
      %v287 = vld [vmem:[%s276 + $0x18] sm:$0xff]
      %v288 = vld [vmem:[%s276 + $0x20] sm:$0xff]
      %v289 = vld [vmem:[%s276 + $0x28] sm:$0xff]
      %v290 = vld [vmem:[%s276 + $0x30] sm:$0xff]
      %v291 = vld [vmem:[%s276 + $0x38] sm:$0xff]
      %v292 = vld [vmem:[%s276 + $0x40] sm:$0xff]
      %v293 = vld [vmem:[%s276 + $0x48] sm:$0xff]
      %v294 = vld [vmem:[%s276 + $0x50] sm:$0xff]
      %v295 = vld [vmem:[%s276 + $0x58] sm:$0xff]
      %v296 = vld [vmem:[%s276 + $0x60] sm:$0xff]
      %v297 = vld [vmem:[%s276 + $0x68] sm:$0xff]
      %v298 = vld [vmem:[%s276 + $0x70] sm:$0xff]
      %v299 = vld [vmem:[%s276 + $0x78] sm:$0xff]
      %v300 = vld [vmem:[%s276 + $0x80] sm:$0xff]
      %v301 = vld [vmem:[%s276 + $0x88] sm:$0xff]
      %v302 = vld [vmem:[%s276 + $0x90] sm:$0xff]
      %v303 = vld [vmem:[%s1] sm:$0xff]
      %v304 = vld [vmem:[%s1 + $0x8] sm:$0xf]
      %v305 = vld [vmem:[%s2] sm:$0x1]
      %v307 = vlaneseq
      %v308 = vshrl.u32 %v307, 7
      %v309 = vsub.s32 0, %v308
      %v310 = vrot.slane %v305, %v309
      %vm312 = vcmask 97280
      %v314 = vsel %vm312, %v284, 0
      %v317 = vsel %vm312, %v285, 0
      %v320 = vsel %vm312, %v286, 0
      %v323 = vsel %vm312, %v287, 0
      %v326 = vsel %vm312, %v288, 0
      %v329 = vsel %vm312, %v289, 0
      %v332 = vsel %vm312, %v290, 0
      %v335 = vsel %vm312, %v291, 0
      %v338 = vsel %vm312, %v292, 0
      %v341 = vsel %vm312, %v293, 0
      %v344 = vsel %vm312, %v294, 0
      %v347 = vsel %vm312, %v295, 0
      %v350 = vsel %vm312, %v296, 0
      %v353 = vsel %vm312, %v297, 0
      %v356 = vsel %vm312, %v298, 0
      %v359 = vsel %vm312, %v299, 0
      %v362 = vsel %vm312, %v300, 0
      %v365 = vsel %vm312, %v301, 0
      %v368 = vsel %vm312, %v302, 0
      %vm370 = vcmask 1043456
      %v372 = vsel %vm370, %v304, 0
      %374 = vmatprep.subr.mxu0 0.0
      %375 = vmatpush1.msra.mxu0 0.0
      %376 = vmatprep.subr.mxu0 0.0
      %377 = vmatpush1.msra.mxu0 0.0
      %378 = vmatprep.subr.mxu0 0.0
      %379 = vmatpush1.msra.mxu0 0.0
      %380 = vmatprep.subr.mxu0 0.0
      %381 = vmatpush1.msra.mxu0 0.0
      %382 = vmatprep.subr.mxu0 0.0
      %383 = vmatpush1.msra.mxu0 0.0
      %384 = vmatprep.subr.mxu0 0.0
      %385 = vmatpush1.msra.mxu0 0.0
      %386 = vmatprep.subr.mxu0 0.0
      %387 = vmatpush1.msra.mxu0 0.0
      %388 = vmatprep.subr.mxu0 0.0
      %389 = vmatpush1.msra.mxu0 0.0
      %390 = vmatprep.subr.mxu0 0.0
      %391 = vmatpush1.msra.mxu0 0.0
      %392 = vmatprep.subr.mxu0 0.0
      %393 = vmatpush1.msra.mxu0 0.0
      %394 = vmatprep.subr.mxu0 0.0
      %395 = vmatpush1.msra.mxu0 0.0
      %396 = vmatprep.subr.mxu0 0.0
      %397 = vmatpush1.msra.mxu0 0.0
      %398 = vmatprep.subr.mxu0 0.0
      %399 = vmatpush1.msra.mxu0 0.0
      %400 = vmatprep.subr.mxu0 0.0
      %401 = vmatpush1.msra.mxu0 0.0
      %402 = vmatprep.subr.mxu0 0.0
      %403 = vmatpush1.msra.mxu0 %v372
      %404 = vmatprep.subr.mxu0 0.0
      %405 = vmatpush1.msra.mxu0 %v303
      %406 = vmatprep.subr.mxu0 0.0
      %407 = vmatpush2.msra.mxu0 0.0
      %408 = vmatprep.subr.mxu0 0.0
      %409 = vmatpush2.msra.mxu0 0.0
      %410 = vmatprep.subr.mxu0 0.0
      %411 = vmatpush2.msra.mxu0 0.0
      %412 = vmatprep.subr.mxu0 0.0
      %413 = vmatpush2.msra.mxu0 0.0
      %414 = vmatprep.subr.mxu0 0.0
      %415 = vmatpush2.msra.mxu0 0.0
      %416 = vmatprep.subr.mxu0 0.0
      %417 = vmatpush2.msra.mxu0 0.0
      %418 = vmatprep.subr.mxu0 0.0
      %419 = vmatpush2.msra.mxu0 0.0
      %420 = vmatprep.subr.mxu0 0.0
      %421 = vmatpush2.msra.mxu0 0.0
      %422 = vmatprep.subr.mxu0 0.0
      %423 = vmatpush2.msra.mxu0 0.0
      %424 = vmatprep.subr.mxu0 0.0
      %425 = vmatpush2.msra.mxu0 0.0
      %426 = vmatprep.subr.mxu0 0.0
      %427 = vmatpush2.msra.mxu0 0.0
      %428 = vmatprep.subr.mxu0 0.0
      %429 = vmatpush2.msra.mxu0 0.0
      %430 = vmatprep.subr.mxu0 0.0
      %431 = vmatpush2.msra.mxu0 0.0
      %432 = vmatprep.subr.mxu0 0.0
      %433 = vmatpush2.msra.mxu0 0.0
      %434 = vmatprep.subr.mxu0 0.0
      %435 = vmatpush2.msra.mxu0 0.0
      %436 = vmatprep.subr.mxu0 0.0
      %437 = vmatpush2.msra.mxu0 0.0
      %438 = vmatprep.mubr.f32.mxu0 0.0
      %439 = vmatmul.mubr.f32.gmra.mxu0 %v314
      %v440 = vpop.f32.mrf.mxu0
      %v441 = vadd.f32 %v310, %v440
      %v442 = vpop.f32.mrf.mxu0
      %443 = vmatprep.mubr.f32.mxu0 0.0
      %444 = vmatmul.mubr.f32.gmra.mxu0 %v317
      %v445 = vpop.f32.mrf.mxu0
      %v446 = vadd.f32 %v310, %v445
      %v447 = vpop.f32.mrf.mxu0
      %448 = vmatprep.mubr.f32.mxu0 0.0
      %449 = vmatmul.mubr.f32.gmra.mxu0 %v320
      %v450 = vpop.f32.mrf.mxu0
      %v451 = vadd.f32 %v310, %v450
      %v452 = vpop.f32.mrf.mxu0
      %453 = vmatprep.mubr.f32.mxu0 0.0
      %454 = vmatmul.mubr.f32.gmra.mxu0 %v323
      %v455 = vpop.f32.mrf.mxu0
      %v456 = vadd.f32 %v310, %v455
      %v457 = vpop.f32.mrf.mxu0
      %458 = vmatprep.mubr.f32.mxu0 0.0
      %459 = vmatmul.mubr.f32.gmra.mxu0 %v326
      %v460 = vpop.f32.mrf.mxu0
      %v461 = vadd.f32 %v310, %v460
      %v462 = vpop.f32.mrf.mxu0
      %463 = vmatprep.mubr.f32.mxu0 0.0
      %464 = vmatmul.mubr.f32.gmra.mxu0 %v329
      %v465 = vpop.f32.mrf.mxu0
      %v466 = vadd.f32 %v310, %v465
      %v467 = vpop.f32.mrf.mxu0
      %468 = vmatprep.mubr.f32.mxu0 0.0
      %469 = vmatmul.mubr.f32.gmra.mxu0 %v332
      %v470 = vpop.f32.mrf.mxu0
      %v471 = vadd.f32 %v310, %v470
      %v472 = vpop.f32.mrf.mxu0
      %473 = vmatprep.mubr.f32.mxu0 0.0
      %474 = vmatmul.mubr.f32.gmra.mxu0 %v335
      %v475 = vpop.f32.mrf.mxu0
      %v476 = vadd.f32 %v310, %v475
      %v477 = vpop.f32.mrf.mxu0
      %478 = vmatprep.mubr.f32.mxu0 0.0
      %479 = vmatmul.mubr.f32.gmra.mxu0 %v338
      %v480 = vpop.f32.mrf.mxu0
      %v481 = vadd.f32 %v310, %v480
      %v482 = vpop.f32.mrf.mxu0
      %483 = vmatprep.mubr.f32.mxu0 0.0
      %484 = vmatmul.mubr.f32.gmra.mxu0 %v341
      %v485 = vpop.f32.mrf.mxu0
      %v486 = vadd.f32 %v310, %v485
      %v487 = vpop.f32.mrf.mxu0
      %488 = vmatprep.mubr.f32.mxu0 0.0
      %489 = vmatmul.mubr.f32.gmra.mxu0 %v344
      %v490 = vpop.f32.mrf.mxu0
      %v491 = vadd.f32 %v310, %v490
      %v492 = vpop.f32.mrf.mxu0
      %493 = vmatprep.mubr.f32.mxu0 0.0
      %494 = vmatmul.mubr.f32.gmra.mxu0 %v347
      %v495 = vpop.f32.mrf.mxu0
      %v496 = vadd.f32 %v310, %v495
      %v497 = vpop.f32.mrf.mxu0
      %498 = vmatprep.mubr.f32.mxu0 0.0
      %499 = vmatmul.mubr.f32.gmra.mxu0 %v350
      %v500 = vpop.f32.mrf.mxu0
      %v501 = vadd.f32 %v310, %v500
      %v502 = vpop.f32.mrf.mxu0
      %503 = vmatprep.mubr.f32.mxu0 0.0
      %504 = vmatmul.mubr.f32.gmra.mxu0 %v353
      %v505 = vpop.f32.mrf.mxu0
      %v506 = vadd.f32 %v310, %v505
      %v507 = vpop.f32.mrf.mxu0
      %508 = vmatprep.mubr.f32.mxu0 0.0
      %509 = vmatmul.mubr.f32.gmra.mxu0 %v356
      %v510 = vpop.f32.mrf.mxu0
      %v511 = vadd.f32 %v310, %v510
      %v512 = vpop.f32.mrf.mxu0
      %513 = vmatprep.mubr.f32.mxu0 0.0
      %514 = vmatmul.mubr.f32.gmra.mxu0 %v359
      %v515 = vpop.f32.mrf.mxu0
      %v516 = vadd.f32 %v310, %v515
      %v517 = vpop.f32.mrf.mxu0
      %518 = vmatprep.mubr.f32.mxu0 0.0
      %519 = vmatmul.mubr.f32.gmra.mxu0 %v362
      %v520 = vpop.f32.mrf.mxu0
      %v521 = vadd.f32 %v310, %v520
      %v522 = vpop.f32.mrf.mxu0
      %523 = vmatprep.mubr.f32.mxu0 0.0
      %524 = vmatmul.mubr.f32.gmra.mxu0 %v365
      %v525 = vpop.f32.mrf.mxu0
      %v526 = vadd.f32 %v310, %v525
      %v527 = vpop.f32.mrf.mxu0
      %528 = vmatprep.mubr.f32.mxu0 0.0
      %529 = vmatmul.mubr.f32.gmra.mxu0 %v368
      %v530 = vpop.f32.mrf.mxu0
      %v531 = vadd.f32 %v310, %v530
      %v532 = vpop.f32.mrf.mxu0
      %533 = vdwg.mxu0
      %v534 = vmax.f32 %v441, 0.0
      %v535 = vmax.f32 %v446, 0.0
      %v536 = vmax.f32 %v451, 0.0
      %v537 = vmax.f32 %v456, 0.0
      %v538 = vmax.f32 %v461, 0.0
      %v539 = vmax.f32 %v466, 0.0
      %v540 = vmax.f32 %v471, 0.0
      %v541 = vmax.f32 %v476, 0.0
      %v542 = vmax.f32 %v481, 0.0
      %v543 = vmax.f32 %v486, 0.0
      %v544 = vmax.f32 %v491, 0.0
      %v545 = vmax.f32 %v496, 0.0
      %v546 = vmax.f32 %v501, 0.0
      %v547 = vmax.f32 %v506, 0.0
      %v548 = vmax.f32 %v511, 0.0
      %v549 = vmax.f32 %v516, 0.0
      %v550 = vmax.f32 %v521, 0.0
      %v551 = vmax.f32 %v526, 0.0
      %v552 = vmax.f32 %v531, 0.0
      %v553 = vld [vmem:[%s3] sm:$0xff]
      %v554 = vld [vmem:[%s3 + $0x8] sm:$0xff]
      %v555 = vld [vmem:[%s3 + $0x10] sm:$0xff]
      %v556 = vld [vmem:[%s3 + $0x18] sm:$0xff]
      %v557 = vld [vmem:[%s4] sm:$0x1]
      %v559 = vlaneseq
      %v560 = vshrl.u32 %v559, 7
      %v561 = vsub.s32 0, %v560
      %v562 = vrot.slane %v557, %v561
      %vm564 = vcmask 261120
      %v566 = vsel %vm564, %v534, 0
      %v569 = vsel %vm564, %v535, 0
      %v572 = vsel %vm564, %v536, 0
      %v575 = vsel %vm564, %v537, 0
      %v578 = vsel %vm564, %v538, 0
      %v581 = vsel %vm564, %v539, 0
      %v584 = vsel %vm564, %v540, 0
      %v587 = vsel %vm564, %v541, 0
      %v590 = vsel %vm564, %v542, 0
      %v593 = vsel %vm564, %v543, 0
      %v596 = vsel %vm564, %v544, 0
      %v599 = vsel %vm564, %v545, 0
      %v602 = vsel %vm564, %v546, 0
      %v605 = vsel %vm564, %v547, 0
      %v608 = vsel %vm564, %v548, 0
      %v611 = vsel %vm564, %v549, 0
      %v614 = vsel %vm564, %v550, 0
      %v617 = vsel %vm564, %v551, 0
      %v620 = vsel %vm564, %v552, 0
      %622 = vmatprep.subr.mxu0 0.0
      %623 = vmatpush1.msra.mxu0 0.0
      %624 = vmatprep.subr.mxu0 0.0
      %625 = vmatpush1.msra.mxu0 0.0
      %626 = vmatprep.subr.mxu0 0.0
      %627 = vmatpush1.msra.mxu0 0.0
      %628 = vmatprep.subr.mxu0 0.0
      %629 = vmatpush1.msra.mxu0 0.0
      %630 = vmatprep.subr.mxu0 0.0
      %631 = vmatpush1.msra.mxu0 0.0
      %632 = vmatprep.subr.mxu0 0.0
      %633 = vmatpush1.msra.mxu0 0.0
      %634 = vmatprep.subr.mxu0 0.0
      %635 = vmatpush1.msra.mxu0 0.0
      %636 = vmatprep.subr.mxu0 0.0
      %637 = vmatpush1.msra.mxu0 0.0
      %638 = vmatprep.subr.mxu0 0.0
      %639 = vmatpush1.msra.mxu0 0.0
      %640 = vmatprep.subr.mxu0 0.0
      %641 = vmatpush1.msra.mxu0 0.0
      %642 = vmatprep.subr.mxu0 0.0
      %643 = vmatpush1.msra.mxu0 0.0
      %644 = vmatprep.subr.mxu0 0.0
      %645 = vmatpush1.msra.mxu0 0.0
      %646 = vmatprep.subr.mxu0 0.0
      %647 = vmatpush1.msra.mxu0 %v556
      %648 = vmatprep.subr.mxu0 0.0
      %649 = vmatpush1.msra.mxu0 %v555
      %650 = vmatprep.subr.mxu0 0.0
      %651 = vmatpush1.msra.mxu0 %v554
      %652 = vmatprep.subr.mxu0 0.0
      %653 = vmatpush1.msra.mxu0 %v553
      %654 = vmatprep.subr.mxu0 0.0
      %655 = vmatpush2.msra.mxu0 0.0
      %656 = vmatprep.subr.mxu0 0.0
      %657 = vmatpush2.msra.mxu0 0.0
      %658 = vmatprep.subr.mxu0 0.0
      %659 = vmatpush2.msra.mxu0 0.0
      %660 = vmatprep.subr.mxu0 0.0
      %661 = vmatpush2.msra.mxu0 0.0
      %662 = vmatprep.subr.mxu0 0.0
      %663 = vmatpush2.msra.mxu0 0.0
      %664 = vmatprep.subr.mxu0 0.0
      %665 = vmatpush2.msra.mxu0 0.0
      %666 = vmatprep.subr.mxu0 0.0
      %667 = vmatpush2.msra.mxu0 0.0
      %668 = vmatprep.subr.mxu0 0.0
      %669 = vmatpush2.msra.mxu0 0.0
      %670 = vmatprep.subr.mxu0 0.0
      %671 = vmatpush2.msra.mxu0 0.0
      %672 = vmatprep.subr.mxu0 0.0
      %673 = vmatpush2.msra.mxu0 0.0
      %674 = vmatprep.subr.mxu0 0.0
      %675 = vmatpush2.msra.mxu0 0.0
      %676 = vmatprep.subr.mxu0 0.0
      %677 = vmatpush2.msra.mxu0 0.0
      %678 = vmatprep.subr.mxu0 0.0
      %679 = vmatpush2.msra.mxu0 0.0
      %680 = vmatprep.subr.mxu0 0.0
      %681 = vmatpush2.msra.mxu0 0.0
      %682 = vmatprep.subr.mxu0 0.0
      %683 = vmatpush2.msra.mxu0 0.0
      %684 = vmatprep.subr.mxu0 0.0
      %685 = vmatpush2.msra.mxu0 0.0
      %686 = vmatprep.mubr.f32.mxu0 0.0
      %687 = vmatmul.mubr.f32.gmra.mxu0 %v566
      %v688 = vpop.f32.mrf.mxu0
      %v689 = vadd.f32 %v562, %v688
      %v690 = vpop.f32.mrf.mxu0
      %691 = vmatprep.mubr.f32.mxu0 0.0
      %692 = vmatmul.mubr.f32.gmra.mxu0 %v569
      %v693 = vpop.f32.mrf.mxu0
      %v694 = vadd.f32 %v562, %v693
      %v695 = vpop.f32.mrf.mxu0
      %696 = vmatprep.mubr.f32.mxu0 0.0
      %697 = vmatmul.mubr.f32.gmra.mxu0 %v572
      %v698 = vpop.f32.mrf.mxu0
      %v699 = vadd.f32 %v562, %v698
      %v700 = vpop.f32.mrf.mxu0
      %701 = vmatprep.mubr.f32.mxu0 0.0
      %702 = vmatmul.mubr.f32.gmra.mxu0 %v575
      %v703 = vpop.f32.mrf.mxu0
      %v704 = vadd.f32 %v562, %v703
      %v705 = vpop.f32.mrf.mxu0
      %706 = vmatprep.mubr.f32.mxu0 0.0
      %707 = vmatmul.mubr.f32.gmra.mxu0 %v578
      %v708 = vpop.f32.mrf.mxu0
      %v709 = vadd.f32 %v562, %v708
      %v710 = vpop.f32.mrf.mxu0
      %711 = vmatprep.mubr.f32.mxu0 0.0
      %712 = vmatmul.mubr.f32.gmra.mxu0 %v581
      %v713 = vpop.f32.mrf.mxu0
      %v714 = vadd.f32 %v562, %v713
      %v715 = vpop.f32.mrf.mxu0
      %716 = vmatprep.mubr.f32.mxu0 0.0
      %717 = vmatmul.mubr.f32.gmra.mxu0 %v584
      %v718 = vpop.f32.mrf.mxu0
      %v719 = vadd.f32 %v562, %v718
      %v720 = vpop.f32.mrf.mxu0
      %721 = vmatprep.mubr.f32.mxu0 0.0
      %722 = vmatmul.mubr.f32.gmra.mxu0 %v587
      %v723 = vpop.f32.mrf.mxu0
      %v724 = vadd.f32 %v562, %v723
      %v725 = vpop.f32.mrf.mxu0
      %726 = vmatprep.mubr.f32.mxu0 0.0
      %727 = vmatmul.mubr.f32.gmra.mxu0 %v590
      %v728 = vpop.f32.mrf.mxu0
      %v729 = vadd.f32 %v562, %v728
      %v730 = vpop.f32.mrf.mxu0
      %731 = vmatprep.mubr.f32.mxu0 0.0
      %732 = vmatmul.mubr.f32.gmra.mxu0 %v593
      %v733 = vpop.f32.mrf.mxu0
      %v734 = vadd.f32 %v562, %v733
      %v735 = vpop.f32.mrf.mxu0
      %736 = vmatprep.mubr.f32.mxu0 0.0
      %737 = vmatmul.mubr.f32.gmra.mxu0 %v596
      %v738 = vpop.f32.mrf.mxu0
      %v739 = vadd.f32 %v562, %v738
      %v740 = vpop.f32.mrf.mxu0
      %741 = vmatprep.mubr.f32.mxu0 0.0
      %742 = vmatmul.mubr.f32.gmra.mxu0 %v599
      %v743 = vpop.f32.mrf.mxu0
      %v744 = vadd.f32 %v562, %v743
      %v745 = vpop.f32.mrf.mxu0
      %746 = vmatprep.mubr.f32.mxu0 0.0
      %747 = vmatmul.mubr.f32.gmra.mxu0 %v602
      %v748 = vpop.f32.mrf.mxu0
      %v749 = vadd.f32 %v562, %v748
      %v750 = vpop.f32.mrf.mxu0
      %751 = vmatprep.mubr.f32.mxu0 0.0
      %752 = vmatmul.mubr.f32.gmra.mxu0 %v605
      %v753 = vpop.f32.mrf.mxu0
      %v754 = vadd.f32 %v562, %v753
      %v755 = vpop.f32.mrf.mxu0
      %756 = vmatprep.mubr.f32.mxu0 0.0
      %757 = vmatmul.mubr.f32.gmra.mxu0 %v608
      %v758 = vpop.f32.mrf.mxu0
      %v759 = vadd.f32 %v562, %v758
      %v760 = vpop.f32.mrf.mxu0
      %761 = vmatprep.mubr.f32.mxu0 0.0
      %762 = vmatmul.mubr.f32.gmra.mxu0 %v611
      %v763 = vpop.f32.mrf.mxu0
      %v764 = vadd.f32 %v562, %v763
      %v765 = vpop.f32.mrf.mxu0
      %766 = vmatprep.mubr.f32.mxu0 0.0
      %767 = vmatmul.mubr.f32.gmra.mxu0 %v614
      %v768 = vpop.f32.mrf.mxu0
      %v769 = vadd.f32 %v562, %v768
      %v770 = vpop.f32.mrf.mxu0
      %771 = vmatprep.mubr.f32.mxu0 0.0
      %772 = vmatmul.mubr.f32.gmra.mxu0 %v617
      %v773 = vpop.f32.mrf.mxu0
      %v774 = vadd.f32 %v562, %v773
      %v775 = vpop.f32.mrf.mxu0
      %776 = vmatprep.mubr.f32.mxu0 0.0
      %777 = vmatmul.mubr.f32.gmra.mxu0 %v620
      %v778 = vpop.f32.mrf.mxu0
      %v779 = vadd.f32 %v562, %v778
      %v780 = vpop.f32.mrf.mxu0
      %781 = vdwg.mxu0
      %v782 = vmax.f32 %v689, 0.0
      %v783 = vmax.f32 %v694, 0.0
      %v784 = vmax.f32 %v699, 0.0
      %v785 = vmax.f32 %v704, 0.0
      %v786 = vmax.f32 %v709, 0.0
      %v787 = vmax.f32 %v714, 0.0
      %v788 = vmax.f32 %v719, 0.0
      %v789 = vmax.f32 %v724, 0.0
      %v790 = vmax.f32 %v729, 0.0
      %v791 = vmax.f32 %v734, 0.0
      %v792 = vmax.f32 %v739, 0.0
      %v793 = vmax.f32 %v744, 0.0
      %v794 = vmax.f32 %v749, 0.0
      %v795 = vmax.f32 %v754, 0.0
      %v796 = vmax.f32 %v759, 0.0
      %v797 = vmax.f32 %v764, 0.0
      %v798 = vmax.f32 %v769, 0.0
      %v799 = vmax.f32 %v774, 0.0
      %v800 = vmax.f32 %v779, 0.0
      %v801 = vld [vmem:[%s5] sm:$0xff]
      %v802 = vld [vmem:[%s5 + $0x8] sm:$0xff]
      %v803 = vld [vmem:[#allocation2] sm:$0x1]
      %v805 = vlaneseq
      %v806 = vshrl.u32 %v805, 7
      %v807 = vsub.s32 0, %v806
      %v808 = vrot.slane %v803, %v807
      %vm810 = vcmask 130048
      %v812 = vsel %vm810, %v782, 0
      %v815 = vsel %vm810, %v783, 0
      %v818 = vsel %vm810, %v784, 0
      %v821 = vsel %vm810, %v785, 0
      %v824 = vsel %vm810, %v786, 0
      %v827 = vsel %vm810, %v787, 0
      %v830 = vsel %vm810, %v788, 0
      %v833 = vsel %vm810, %v789, 0
      %v836 = vsel %vm810, %v790, 0
      %v839 = vsel %vm810, %v791, 0
      %v842 = vsel %vm810, %v792, 0
      %v845 = vsel %vm810, %v793, 0
      %v848 = vsel %vm810, %v794, 0
      %v851 = vsel %vm810, %v795, 0
      %v854 = vsel %vm810, %v796, 0
      %v857 = vsel %vm810, %v797, 0
      %v860 = vsel %vm810, %v798, 0
      %v863 = vsel %vm810, %v799, 0
      %v866 = vsel %vm810, %v800, 0
      %868 = vmatprep.subr.mxu0 0.0
      %869 = vmatpush1.msra.mxu0 0.0
      %870 = vmatprep.subr.mxu0 0.0
      %871 = vmatpush1.msra.mxu0 0.0
      %872 = vmatprep.subr.mxu0 0.0
      %873 = vmatpush1.msra.mxu0 0.0
      %874 = vmatprep.subr.mxu0 0.0
      %875 = vmatpush1.msra.mxu0 0.0
      %876 = vmatprep.subr.mxu0 0.0
      %877 = vmatpush1.msra.mxu0 0.0
      %878 = vmatprep.subr.mxu0 0.0
      %879 = vmatpush1.msra.mxu0 0.0
      %880 = vmatprep.subr.mxu0 0.0
      %881 = vmatpush1.msra.mxu0 0.0
      %882 = vmatprep.subr.mxu0 0.0
      %883 = vmatpush1.msra.mxu0 0.0
      %884 = vmatprep.subr.mxu0 0.0
      %885 = vmatpush1.msra.mxu0 0.0
      %886 = vmatprep.subr.mxu0 0.0
      %887 = vmatpush1.msra.mxu0 0.0
      %888 = vmatprep.subr.mxu0 0.0
      %889 = vmatpush1.msra.mxu0 0.0
      %890 = vmatprep.subr.mxu0 0.0
      %891 = vmatpush1.msra.mxu0 0.0
      %892 = vmatprep.subr.mxu0 0.0
      %893 = vmatpush1.msra.mxu0 0.0
      %894 = vmatprep.subr.mxu0 0.0
      %895 = vmatpush1.msra.mxu0 0.0
      %896 = vmatprep.subr.mxu0 0.0
      %897 = vmatpush1.msra.mxu0 %v802
      %898 = vmatprep.subr.mxu0 0.0
      %899 = vmatpush1.msra.mxu0 %v801
      %900 = vmatprep.subr.mxu0 0.0
      %901 = vmatpush2.msra.mxu0 0.0
      %902 = vmatprep.subr.mxu0 0.0
      %903 = vmatpush2.msra.mxu0 0.0
      %904 = vmatprep.subr.mxu0 0.0
      %905 = vmatpush2.msra.mxu0 0.0
      %906 = vmatprep.subr.mxu0 0.0
      %907 = vmatpush2.msra.mxu0 0.0
      %908 = vmatprep.subr.mxu0 0.0
      %909 = vmatpush2.msra.mxu0 0.0
      %910 = vmatprep.subr.mxu0 0.0
      %911 = vmatpush2.msra.mxu0 0.0
      %912 = vmatprep.subr.mxu0 0.0
      %913 = vmatpush2.msra.mxu0 0.0
      %914 = vmatprep.subr.mxu0 0.0
      %915 = vmatpush2.msra.mxu0 0.0
      %916 = vmatprep.subr.mxu0 0.0
      %917 = vmatpush2.msra.mxu0 0.0
      %918 = vmatprep.subr.mxu0 0.0
      %919 = vmatpush2.msra.mxu0 0.0
      %920 = vmatprep.subr.mxu0 0.0
      %921 = vmatpush2.msra.mxu0 0.0
      %922 = vmatprep.subr.mxu0 0.0
      %923 = vmatpush2.msra.mxu0 0.0
      %924 = vmatprep.subr.mxu0 0.0
      %925 = vmatpush2.msra.mxu0 0.0
      %926 = vmatprep.subr.mxu0 0.0
      %927 = vmatpush2.msra.mxu0 0.0
      %928 = vmatprep.subr.mxu0 0.0
      %929 = vmatpush2.msra.mxu0 0.0
      %930 = vmatprep.subr.mxu0 0.0
      %931 = vmatpush2.msra.mxu0 0.0
      %932 = vmatprep.mubr.f32.mxu0 0.0
      %933 = vmatmul.mubr.f32.gmra.mxu0 %v812
      %v934 = vpop.f32.mrf.mxu0
      %v935 = vadd.f32 %v808, %v934
      %v936 = vpop.f32.mrf.mxu0
      %937 = vmatprep.mubr.f32.mxu0 0.0
      %938 = vmatmul.mubr.f32.gmra.mxu0 %v815
      %v939 = vpop.f32.mrf.mxu0
      %v940 = vadd.f32 %v808, %v939
      %v941 = vpop.f32.mrf.mxu0
      %942 = vmatprep.mubr.f32.mxu0 0.0
      %943 = vmatmul.mubr.f32.gmra.mxu0 %v818
      %v944 = vpop.f32.mrf.mxu0
      %v945 = vadd.f32 %v808, %v944
      %v946 = vpop.f32.mrf.mxu0
      %947 = vmatprep.mubr.f32.mxu0 0.0
      %948 = vmatmul.mubr.f32.gmra.mxu0 %v821
      %v949 = vpop.f32.mrf.mxu0
      %v950 = vadd.f32 %v808, %v949
      %v951 = vpop.f32.mrf.mxu0
      %952 = vmatprep.mubr.f32.mxu0 0.0
      %953 = vmatmul.mubr.f32.gmra.mxu0 %v824
      %v954 = vpop.f32.mrf.mxu0
      %v955 = vadd.f32 %v808, %v954
      %v956 = vpop.f32.mrf.mxu0
      %957 = vmatprep.mubr.f32.mxu0 0.0
      %958 = vmatmul.mubr.f32.gmra.mxu0 %v827
      %v959 = vpop.f32.mrf.mxu0
      %v960 = vadd.f32 %v808, %v959
      %v961 = vpop.f32.mrf.mxu0
      %962 = vmatprep.mubr.f32.mxu0 0.0
      %963 = vmatmul.mubr.f32.gmra.mxu0 %v830
      %v964 = vpop.f32.mrf.mxu0
      %v965 = vadd.f32 %v808, %v964
      %v966 = vpop.f32.mrf.mxu0
      %967 = vmatprep.mubr.f32.mxu0 0.0
      %968 = vmatmul.mubr.f32.gmra.mxu0 %v833
      %v969 = vpop.f32.mrf.mxu0
      %v970 = vadd.f32 %v808, %v969
      %v971 = vpop.f32.mrf.mxu0
      %972 = vmatprep.mubr.f32.mxu0 0.0
      %973 = vmatmul.mubr.f32.gmra.mxu0 %v836
      %v974 = vpop.f32.mrf.mxu0
      %v975 = vadd.f32 %v808, %v974
      %v976 = vpop.f32.mrf.mxu0
      %977 = vmatprep.mubr.f32.mxu0 0.0
      %978 = vmatmul.mubr.f32.gmra.mxu0 %v839
      %v979 = vpop.f32.mrf.mxu0
      %v980 = vadd.f32 %v808, %v979
      %v981 = vpop.f32.mrf.mxu0
      %982 = vmatprep.mubr.f32.mxu0 0.0
      %983 = vmatmul.mubr.f32.gmra.mxu0 %v842
      %v984 = vpop.f32.mrf.mxu0
      %v985 = vadd.f32 %v808, %v984
      %v986 = vpop.f32.mrf.mxu0
      %987 = vmatprep.mubr.f32.mxu0 0.0
      %988 = vmatmul.mubr.f32.gmra.mxu0 %v845
      %v989 = vpop.f32.mrf.mxu0
      %v990 = vadd.f32 %v808, %v989
      %v991 = vpop.f32.mrf.mxu0
      %992 = vmatprep.mubr.f32.mxu0 0.0
      %993 = vmatmul.mubr.f32.gmra.mxu0 %v848
      %v994 = vpop.f32.mrf.mxu0
      %v995 = vadd.f32 %v808, %v994
      %v996 = vpop.f32.mrf.mxu0
      %997 = vmatprep.mubr.f32.mxu0 0.0
      %998 = vmatmul.mubr.f32.gmra.mxu0 %v851
      %v999 = vpop.f32.mrf.mxu0
      %v1000 = vadd.f32 %v808, %v999
      %v1001 = vpop.f32.mrf.mxu0
      %1002 = vmatprep.mubr.f32.mxu0 0.0
      %1003 = vmatmul.mubr.f32.gmra.mxu0 %v854
      %v1004 = vpop.f32.mrf.mxu0
      %v1005 = vadd.f32 %v808, %v1004
      %v1006 = vpop.f32.mrf.mxu0
      %1007 = vmatprep.mubr.f32.mxu0 0.0
      %1008 = vmatmul.mubr.f32.gmra.mxu0 %v857
      %v1009 = vpop.f32.mrf.mxu0
      %v1010 = vadd.f32 %v808, %v1009
      %v1011 = vpop.f32.mrf.mxu0
      %1012 = vmatprep.mubr.f32.mxu0 0.0
      %1013 = vmatmul.mubr.f32.gmra.mxu0 %v860
      %v1014 = vpop.f32.mrf.mxu0
      %v1015 = vadd.f32 %v808, %v1014
      %v1016 = vpop.f32.mrf.mxu0
      %1017 = vmatprep.mubr.f32.mxu0 0.0
      %1018 = vmatmul.mubr.f32.gmra.mxu0 %v863
      %v1019 = vpop.f32.mrf.mxu0
      %v1020 = vadd.f32 %v808, %v1019
      %v1021 = vpop.f32.mrf.mxu0
      %1022 = vmatprep.mubr.f32.mxu0 0.0
      %1023 = vmatmul.mubr.f32.gmra.mxu0 %v866
      %v1024 = vpop.f32.mrf.mxu0
      %v1025 = vadd.f32 %v808, %v1024
      %v1026 = vpop.f32.mrf.mxu0
      %1027 = vdwg.mxu0
      %v1028 = vxor.u32 %v935, 2147483648
      %v1029 = vxor.u32 %v940, 2147483648
      %v1030 = vxor.u32 %v945, 2147483648
      %v1031 = vxor.u32 %v950, 2147483648
      %v1032 = vxor.u32 %v955, 2147483648
      %v1033 = vxor.u32 %v960, 2147483648
      %v1034 = vxor.u32 %v965, 2147483648
      %v1035 = vxor.u32 %v970, 2147483648
      %v1036 = vxor.u32 %v975, 2147483648
      %v1037 = vxor.u32 %v980, 2147483648
      %v1038 = vxor.u32 %v985, 2147483648
      %v1039 = vxor.u32 %v990, 2147483648
      %v1040 = vxor.u32 %v995, 2147483648
      %v1041 = vxor.u32 %v1000, 2147483648
      %v1042 = vxor.u32 %v1005, 2147483648
      %v1043 = vxor.u32 %v1010, 2147483648
      %v1044 = vxor.u32 %v1015, 2147483648
      %v1045 = vxor.u32 %v1020, 2147483648
      %v1046 = vxor.u32 %v1025, 2147483648
      %v1047 = vmul.f32 %v1028, 1.442695
      %v1048 = vpow.pop %v1047
      %v1049 = vmul.f32 %v1029, 1.442695
      %v1050 = vpow.pop %v1049
      %v1051 = vmul.f32 %v1030, 1.442695
      %v1052 = vpow.pop %v1051
      %v1053 = vmul.f32 %v1031, 1.442695
      %v1054 = vpow.pop %v1053
      %v1055 = vmul.f32 %v1032, 1.442695
      %v1056 = vpow.pop %v1055
      %v1057 = vmul.f32 %v1033, 1.442695
      %v1058 = vpow.pop %v1057
      %v1059 = vmul.f32 %v1034, 1.442695
      %v1060 = vpow.pop %v1059
      %v1061 = vmul.f32 %v1035, 1.442695
      %v1062 = vpow.pop %v1061
      %v1063 = vmul.f32 %v1036, 1.442695
      %v1064 = vpow.pop %v1063
      %v1065 = vmul.f32 %v1037, 1.442695
      %v1066 = vpow.pop %v1065
      %v1067 = vmul.f32 %v1038, 1.442695
      %v1068 = vpow.pop %v1067
      %v1069 = vmul.f32 %v1039, 1.442695
      %v1070 = vpow.pop %v1069
      %v1071 = vmul.f32 %v1040, 1.442695
      %v1072 = vpow.pop %v1071
      %v1073 = vmul.f32 %v1041, 1.442695
      %v1074 = vpow.pop %v1073
      %v1075 = vmul.f32 %v1042, 1.442695
      %v1076 = vpow.pop %v1075
      %v1077 = vmul.f32 %v1043, 1.442695
      %v1078 = vpow.pop %v1077
      %v1079 = vmul.f32 %v1044, 1.442695
      %v1080 = vpow.pop %v1079
      %v1081 = vmul.f32 %v1045, 1.442695
      %v1082 = vpow.pop %v1081
      %v1083 = vmul.f32 %v1046, 1.442695
      %v1084 = vpow.pop %v1083
      %v1085 = vadd.f32 %v1048, 1.0
      %v1086 = vadd.f32 %v1050, 1.0
      %v1087 = vadd.f32 %v1052, 1.0
      %v1088 = vadd.f32 %v1054, 1.0
      %v1089 = vadd.f32 %v1056, 1.0
      %v1090 = vadd.f32 %v1058, 1.0
      %v1091 = vadd.f32 %v1060, 1.0
      %v1092 = vadd.f32 %v1062, 1.0
      %v1093 = vadd.f32 %v1064, 1.0
      %v1094 = vadd.f32 %v1066, 1.0
      %v1095 = vadd.f32 %v1068, 1.0
      %v1096 = vadd.f32 %v1070, 1.0
      %v1097 = vadd.f32 %v1072, 1.0
      %v1098 = vadd.f32 %v1074, 1.0
      %v1099 = vadd.f32 %v1076, 1.0
      %v1100 = vadd.f32 %v1078, 1.0
      %v1101 = vadd.f32 %v1080, 1.0
      %v1102 = vadd.f32 %v1082, 1.0
      %v1103 = vadd.f32 %v1084, 1.0
      %v1104 = vrcp.pop %v1085
      %v1105 = vmul.f32 1.0, %v1104
      %v1106 = vrcp.pop %v1086
      %v1107 = vmul.f32 1.0, %v1106
      %v1108 = vrcp.pop %v1087
      %v1109 = vmul.f32 1.0, %v1108
      %v1110 = vrcp.pop %v1088
      %v1111 = vmul.f32 1.0, %v1110
      %v1112 = vrcp.pop %v1089
      %v1113 = vmul.f32 1.0, %v1112
      %v1114 = vrcp.pop %v1090
      %v1115 = vmul.f32 1.0, %v1114
      %v1116 = vrcp.pop %v1091
      %v1117 = vmul.f32 1.0, %v1116
      %v1118 = vrcp.pop %v1092
      %v1119 = vmul.f32 1.0, %v1118
      %v1120 = vrcp.pop %v1093
      %v1121 = vmul.f32 1.0, %v1120
      %v1122 = vrcp.pop %v1094
      %v1123 = vmul.f32 1.0, %v1122
      %v1124 = vrcp.pop %v1095
      %v1125 = vmul.f32 1.0, %v1124
      %v1126 = vrcp.pop %v1096
      %v1127 = vmul.f32 1.0, %v1126
      %v1128 = vrcp.pop %v1097
      %v1129 = vmul.f32 1.0, %v1128
      %v1130 = vrcp.pop %v1098
      %v1131 = vmul.f32 1.0, %v1130
      %v1132 = vrcp.pop %v1099
      %v1133 = vmul.f32 1.0, %v1132
      %v1134 = vrcp.pop %v1100
      %v1135 = vmul.f32 1.0, %v1134
      %v1136 = vrcp.pop %v1101
      %v1137 = vmul.f32 1.0, %v1136
      %v1138 = vrcp.pop %v1102
      %v1139 = vmul.f32 1.0, %v1138
      %v1140 = vrcp.pop %v1103
      %v1141 = vmul.f32 1.0, %v1140
      %vm1142 = vcmask 7168
      %1143 = vst.msk [vmem:[%s282] sm:$0xff] %vm1142, %v1105
      %1144 = vst.msk [vmem:[%s282 + $0x8] sm:$0xff] %vm1142, %v1107
      %1145 = vst.msk [vmem:[%s282 + $0x10] sm:$0xff] %vm1142, %v1109
      %1146 = vst.msk [vmem:[%s282 + $0x18] sm:$0xff] %vm1142, %v1111
      %1147 = vst.msk [vmem:[%s282 + $0x20] sm:$0xff] %vm1142, %v1113
      %1148 = vst.msk [vmem:[%s282 + $0x28] sm:$0xff] %vm1142, %v1115
      %1149 = vst.msk [vmem:[%s282 + $0x30] sm:$0xff] %vm1142, %v1117
      %1150 = vst.msk [vmem:[%s282 + $0x38] sm:$0xff] %vm1142, %v1119
      %1151 = vst.msk [vmem:[%s282 + $0x40] sm:$0xff] %vm1142, %v1121
      %1152 = vst.msk [vmem:[%s282 + $0x48] sm:$0xff] %vm1142, %v1123
      %1153 = vst.msk [vmem:[%s282 + $0x50] sm:$0xff] %vm1142, %v1125
      %1154 = vst.msk [vmem:[%s282 + $0x58] sm:$0xff] %vm1142, %v1127
      %1155 = vst.msk [vmem:[%s282 + $0x60] sm:$0xff] %vm1142, %v1129
      %1156 = vst.msk [vmem:[%s282 + $0x68] sm:$0xff] %vm1142, %v1131
      %1157 = vst.msk [vmem:[%s282 + $0x70] sm:$0xff] %vm1142, %v1133
      %1158 = vst.msk [vmem:[%s282 + $0x78] sm:$0xff] %vm1142, %v1135
      %1159 = vst.msk [vmem:[%s282 + $0x80] sm:$0xff] %vm1142, %v1137
      %1160 = vst.msk [vmem:[%s282 + $0x88] sm:$0xff] %vm1142, %v1139
      %1161 = vst.msk [vmem:[%s282 + $0x90] sm:$0xff] %vm1142, %v1141
      %s1162 = smul.u32 19, %s20
      %p1163 = scmp.lt.s32.totalorder %s1162, 37
      %s1164 = scalar_select %p1163, %s1162, 37
      %s1165 = smul.addr %s1164, 8
      %s1166 = scalar_lea.vmem %s7, %s1165
      // Predicated region
      $region49: #{tpu_custom_call.1} parent=47 // pred_check
        %p1167 = pneg %p190
      $region50: #{tpu_custom_call.1} parent=47 // pred_check_branch
        %1169 = sbr.rel (%p1167) target = $region52
      $region51: #{tpu_custom_call.1} parent=47 // pred_region
        %s1170 = smul.u32 19, %s20
      $region52: #{tpu_custom_call.1} parent=47 // pred_fallthru
        _
    $region48: #{tpu_custom_call.1} parent=5 // pred_fallthru
      _
    %p1171 = scmp.le.s32.totalorder 2, %s15
    // Predicated region
    $region53: #{tpu_custom_call.1} parent=5 // pred_check
      %p1172 = pneg %p1171
    $region54: #{tpu_custom_call.1} parent=5 // pred_check_branch
      %1174 = sbr.rel (%p1172) target = $region56
    $region55: #{tpu_custom_call.1} parent=5 // pred_region
      %s1175 = ssub.s32 %s15, 2
      // Predicated region
      $region57: #{tpu_custom_call.1} parent=55 // pred_check
        %p1176 = pneg %p196
      $region58: #{tpu_custom_call.1} parent=55 // pred_check_branch
        %1178 = sbr.rel (%p1176) target = $region60
      $region59: #{tpu_custom_call.1} parent=55 // pred_region
        %s1179 = smul.u32 19, %s21
        %p1180 = scmp.lt.s32.totalorder %s1179, 37
        %s1181 = scalar_select %p1180, %s1179, 37
        %s1182 = smul.addr %s1181, 8
        %s1183 = scalar_lea.vmem %s7, %s1182
      $region60: #{tpu_custom_call.1} parent=55 // pred_fallthru
        _
    $region56: #{tpu_custom_call.1} parent=5 // pred_fallthru
      _
  $region6: #{tpu_custom_call.1} parent=0 // loop_footer
    %s19 = sadd.s32 1, %s15
  $region7: #{tpu_custom_call.1} parent=0 // loop_footer_branch
    %14 = sbr.rel target = $region3
  $region8: #{tpu_custom_call.1} parent=0 // loop_exit
    _

</llo_original>
